<compile_context>
chip_gen: v7x
topology: tpu7x:2x2x1
jax: 0.10.0
libtpu: 0.0.40
codegen_flags: <defaults>
</compile_context>

<pallas_src>
import jax
import jax.numpy as jnp
from jax.experimental import pallas as pl
from jax.experimental.pallas import tpu as pltpu


def _identity_copy_kernel(x_ref, y_ref):
    # submodule = Identity(); the module returns x unchanged.  The per-row
    # dropout-mask product is dead code in the PyTorch module, so it is not
    # computed here at all (saves the PRNG work and a full extra HBM write).
    y_ref[...] = x_ref[...]


def _sublane_granule(itemsize):
    # f32 -> 8 rows, bf16 -> 16, int8/fp8 -> 32 (sub-32-bit packs along sublanes).
    return max(8, 32 // max(1, itemsize))


def _pick_tiles(R, C, itemsize):
    """Pick (TR, TC) so (in + out) x double-buffered windows fit a VMEM budget
    that is safe on every generation (v5e 16 MiB scoped default, v6e 32 MiB
    default, v7x 32 MiB default / 64 MiB physical)."""
    budget = 12 * 1024 * 1024          # bytes of window buffers we allow
    per_elem = 2 * 2 * itemsize        # (input + output) x 2 pipeline buffers
    gran = _sublane_granule(itemsize)

    # Lane-axis tile: keep full rows if they fit alongside >=1 sublane granule
    # of rows; otherwise the largest multiple of 128 that fits.
    if C <= 128 or C * gran * per_elem <= budget:
        TC = C
    else:
        TC = (budget // (gran * per_elem)) // 128 * 128
        TC = int(max(128, min(TC, (C // 128) * 128)))

    # Sublane-axis tile: as large as fits in the remaining budget, rounded to
    # the dtype sublane granule (partial trailing blocks are handled by Pallas).
    TR = budget // (TC * per_elem)
    TR = int(max(gran, (TR // gran) * gran))
    if TR >= R:
        TR = R                          # full extent is always a legal block dim
    return TR, TC


def _identity_copy_2d(x2d):
    R, C = x2d.shape
    itemsize = jnp.dtype(x2d.dtype).itemsize
    TR, TC = _pick_tiles(R, C, itemsize)
    nbytes = R * C * itemsize
    return pl.pallas_call(
        _identity_copy_kernel,
        out_shape=jax.ShapeDtypeStruct((R, C), x2d.dtype),
        grid=(pl.cdiv(R, TR), pl.cdiv(C, TC)),
        in_specs=[pl.BlockSpec((TR, TC), lambda i, j: (i, j))],
        out_specs=pl.BlockSpec((TR, TC), lambda i, j: (i, j)),
        # Purely memory-bound custom call: tell XLA so it can schedule around it.
        cost_estimate=pl.CostEstimate(flops=0, transcendentals=0,
                                      bytes_accessed=2 * nbytes),
        compiler_params=pltpu.CompilerParams(
            # "parallel" vs "arbitrary" has no measured codegen impact for a
            # memcpy; keep "arbitrary" and rely on the tile-size budget above.
            dimension_semantics=("arbitrary", "arbitrary"),
            vmem_limit_bytes=32 * 1024 * 1024),
    )(x2d)


def dropout_if_training(x, *, p=0.0, training=True, materialize_copy=False):
    """Forward of DropoutIfTraining (submodule = Identity).

    The PyTorch module computes `out = x * dropout(ones((B, 1)))` but returns
    x unchanged, so `p` / `training` have no observable effect.  The fastest
    correct implementation therefore returns x directly (zero HBM traffic).
    Set `materialize_copy=True` to launch the tiled Pallas identity-copy
    kernel instead (when a custom-call boundary / fresh buffer is required).
    """
    del p, training  # dead w.r.t. the module's return value

    if not materialize_copy:
        return x  # dominant optimization: elide the kernel entirely

    orig_shape = x.shape
    total = int(x.size)
    lead = int(orig_shape[0]) if x.ndim >= 1 else 1
    trail = total // max(1, lead)

    # Present a lane-dense 2D slab (last dim a multiple of 128) so stores are
    # unmasked `vst`; the identity copy preserves element order, so a reshape
    # round-trip is free of semantic consequences.
    if x.ndim >= 2 and trail >= 128 and trail % 128 == 0:
        x2d = x.reshape(lead, trail)
    elif total % 128 == 0:
        L = 128
        while L * 2 <= 8192 and total % (L * 2) == 0:
            L *= 2
        x2d = x.reshape(total // L, L)
    else:
        # TODO(synk): trailing extent not a multiple of 128 falls back to the
        # natural 2D layout (masked vst.msk partial stores); still correct.
        x2d = x.reshape(max(1, lead), -1)

    y2d = _identity_copy_2d(x2d)
    return y2d.reshape(orig_shape)


if __name__ == "__main__":
    key = jax.random.PRNGKey(0)
    B, H = 8, 128
    x = jax.random.normal(key, (B, H), dtype=jnp.float32)

    # Default path: kernel elided, module semantics are `return x`.
    y_fast = jax.block_until_ready(dropout_if_training(x, p=0.5, training=True))
    assert y_fast.shape == x.shape and y_fast.dtype == x.dtype
    assert bool(jnp.allclose(y_fast, x))

    # Explicit Pallas kernel path (identity copy), run once.
    y = dropout_if_training(x, p=0.5, training=True, materialize_copy=True)
    y = jax.block_until_ready(y)
    assert y.shape == x.shape and y.dtype == x.dtype
    assert bool(jnp.allclose(y, x)), "DropoutIfTraining must return x unchanged"
    print("KERNEL_OK")
</pallas_src>

<mosaic_0001>
module attributes {stable_mosaic.version = 11 : i64} {
  func.func @_identity_copy_kernel(%arg0: i32, %arg1: i32, %arg2: memref<8x128xf32, #tpu.memory_space<vmem>>, %arg3: memref<8x128xf32, #tpu.memory_space<vmem>>) attributes {dimension_semantics = [#tpu.dimension_semantics<arbitrary>, #tpu.dimension_semantics<arbitrary>], iteration_bounds = array<i64: 1, 1>, scalar_prefetch = 0 : i64, scratch_operands = 0 : i64, tpu.core_type = #tpu.core_type<tc>, window_params = [{transform_indices = @transform_0, window_bounds = array<i64: 8, 128>}, {transform_indices = @transform_1, window_bounds = array<i64: 8, 128>}]} {
    %c0 = arith.constant 0 : index
    %c0_0 = arith.constant 0 : index
    %0 = vector.load %arg2[%c0, %c0_0] : memref<8x128xf32, #tpu.memory_space<vmem>>, vector<8x128xf32>
    %c0_1 = arith.constant 0 : index
    %c0_2 = arith.constant 0 : index
    %1 = vector.load %arg3[%c0_1, %c0_2] : memref<8x128xf32, #tpu.memory_space<vmem>>, vector<8x128xf32>
    tpu.vector_store %arg3[%c0_1, %c0_2], %0 {strides = array<i32>} : memref<8x128xf32, #tpu.memory_space<vmem>>, vector<8x128xf32>,
    return
  }
  func.func @transform_0(%arg0: i32, %arg1: i32) -> (i32, i32) {
    %c0_i32 = arith.constant 0 : i32
    return %arg0, %arg1 : i32, i32
  }
  func.func @transform_1(%arg0: i32, %arg1: i32) -> (i32, i32) {
    %c0_i32 = arith.constant 0 : i32
    return %arg0, %arg1 : i32, i32
  }
}

</mosaic_0001>

<llo_original>
// kernel: tpu_custom_call.1
$region0: #{tpu_custom_call.1}
  #allocation0 [shape = 'u32[]', space=smem, size = 0x4, offset = 0x4, fixed_abs, tag = 'smem constant byte address 0x4 - core index']
  #allocation1 [shape = 'u32[144,128]{1,0:T(1,128)}', space=vmem, size = 0x12000, scoped, tag = 'internal scratch']
  %s0 = inlined_call_operand.hbm [shape: f32[8,128], index: 0, kind: input, shape index: {}]
  %s1 = inlined_call_operand.hbm [shape: f32[8,128], index: 1, kind: output, shape index: {}]
  %s2 = sld [smem:[#allocation0]]
  $region18: #{tpu_custom_call.1} parent=0
    _
  %s4 = ssub.s32 1, %s2
  %s5 = scalar_select 0, %s4, %s2
  $region1: #{tpu_custom_call.1} parent=0
    #allocation2 [shape = 'u8[4096]{0}', space=vmem, size = 0x1000, scoped, tag = 'input window, operand 0, single buffered']
    #allocation3 [shape = 's32[1]{0}', space=sflag, size = 0x4, scoped, tag = 'scoped memory for tpu_custom_call.1']
    #allocation4 [shape = 's32[1]{0}', space=sflag, size = 0x4, scoped, tag = 'scoped memory for tpu_custom_call.1']
    #allocation5 [shape = 'u8[4096]{0}', space=vmem, size = 0x1000, scoped, tag = 'output window, operand 0, single buffered']
    %6 = vsyncpa [#allocation3], 0
    %7 = vsyncpa [#allocation4], 0
    // Predicated region
    $region2: #{tpu_custom_call.1} parent=1 // pred_check
      _
    $region3: #{tpu_custom_call.1} parent=1 // pred_check_branch
      %9 = sbr.rel (0) target = $region5
    $region4: #{tpu_custom_call.1} parent=1 // pred_region
      %s11 = ssub.s32 128, 128
      %12 = vsyncadd [#allocation3], %s11
      %s14 = sshll.u32 [#allocation2], 4
      %s15 = int_to_ptr.vmem [resolvable:$true] %s14
      %17 = dma.hbm_to_vmem [thread:$0]  %s0, 128, %s15, [#allocation3]
    $region5: #{tpu_custom_call.1} parent=1 // pred_fallthru
      _
    // Predicated region
    $region6: #{tpu_custom_call.1} parent=1 // pred_check
      _
    $region7: #{tpu_custom_call.1} parent=1 // pred_check_branch
      %19 = sbr.rel (0) target = $region9
    $region8: #{tpu_custom_call.1} parent=1 // pred_region
      %20 = dma.done [#allocation3], 128
    $region9: #{tpu_custom_call.1} parent=1 // pred_fallthru
      _
    %v21 = vld [vmem:[#allocation2] sm:$0xff]
    %22 = vst [vmem:[#allocation5] sm:$0xff] %v21
    // Predicated region
    $region10: #{tpu_custom_call.1} parent=1 // pred_check
      _
    $region11: #{tpu_custom_call.1} parent=1 // pred_check_branch
      %24 = sbr.rel (0) target = $region13
    $region12: #{tpu_custom_call.1} parent=1 // pred_region
      %s26 = ssub.s32 128, 128
      %27 = vsyncadd [#allocation4], %s26
      %s29 = sshll.u32 [#allocation5], 4
      %s30 = int_to_ptr.vmem [resolvable:$true] %s29
      %32 = dma.vmem_to_hbm [thread:$0]  %s30, 128, %s1, [#allocation4]
    $region13: #{tpu_custom_call.1} parent=1 // pred_fallthru
      _
    // Predicated region
    $region14: #{tpu_custom_call.1} parent=1 // pred_check
      _
    $region15: #{tpu_custom_call.1} parent=1 // pred_check_branch
      %34 = sbr.rel (0) target = $region17
    $region16: #{tpu_custom_call.1} parent=1 // pred_region
      %35 = dma.done [#allocation4], 128
    $region17: #{tpu_custom_call.1} parent=1 // pred_fallthru
      _
    %36 = vsyncpa [#allocation3], 1
    %37 = vsyncpa [#allocation4], 1

</llo_original>
